<compile_context>
chip_gen: v7x
topology: tpu7x:2x2x1
jax: 0.10.0
libtpu: 0.0.40
codegen_flags: <defaults>
</compile_context>

<pallas_src>
import jax
import jax.numpy as jnp
from jax.experimental import pallas as pl
from jax.experimental.pallas import tpu as pltpu

LANE = 128
SUBLANE = 8
NEG_BIG = -1e30          # masks padded logit lanes out of the softmax


def _round_up(n, m):
    return ((n + m - 1) // m) * m


# ----------------------------------------------------------------------------- kernel
def rnn_seq_kernel(x_ref, h0_ref,
                   wx_h_ref, wh_h_ref, b_h_ref,
                   wx_o_ref, wh_o_ref, b_o_ref,
                   woo_h_ref, woo_o_ref, b_oo_ref,
                   out_ref, hid_ref):
    """Fused recurrence: grid=(T,).  hid_ref (constant block index) stays
    VMEM-resident across all steps and carries the recurrent state."""
    t = pl.program_id(0)

    @pl.when(t == 0)
    def _():
        hid_ref[...] = h0_ref[...]

    x = x_ref[...]            # (B_pad, C_pad)  = [category | input], zero padded
    h = hid_ref[...]          # (B_pad, H_pad)

    # hidden = i2h(cat(category, input, hidden))   (split-weight form, no concat)
    h_new = (jnp.dot(x, wx_h_ref[...], preferred_element_type=jnp.float32)
             + jnp.dot(h, wh_h_ref[...], preferred_element_type=jnp.float32)
             + b_h_ref[...])

    # output = i2o(cat(category, input, hidden))
    o1 = (jnp.dot(x, wx_o_ref[...], preferred_element_type=jnp.float32)
          + jnp.dot(h, wh_o_ref[...], preferred_element_type=jnp.float32)
          + b_o_ref[...])
    # TODO(synk): nn.Dropout(0.5) is identity in eval mode; training-mode
    # stochastic dropout (pltpu.prng_seed / prng_random_bits) not implemented.

    # output = o2o(cat(hidden, output)):  cat(h,o) @ W^T == h @ Wh + o @ Wo
    logits = (jnp.dot(h_new, woo_h_ref[...], preferred_element_type=jnp.float32)
              + jnp.dot(o1, woo_o_ref[...], preferred_element_type=jnp.float32)
              + b_oo_ref[...])          # padded lanes carry NEG_BIG -> exp()==0

    # LogSoftmax(dim=1), numerically stable (pad lanes don't affect max or sum)
    m = jnp.max(logits, axis=1, keepdims=True)
    shifted = logits - m
    lse = jnp.log(jnp.sum(jnp.exp(shifted), axis=1, keepdims=True))

    out_ref[...] = (shifted - lse).astype(out_ref.dtype)
    hid_ref[...] = h_new.astype(hid_ref.dtype)


# ----------------------------------------------------------------------------- params
def init_params(key, n_categories, input_size, hidden_size, output_size):
    """nn.Linear-style U(-1/sqrt(fan_in), 1/sqrt(fan_in)) init, PyTorch layout."""
    c_in = n_categories + input_size + hidden_size
    oc_in = hidden_size + output_size
    ks = jax.random.split(key, 6)

    def lin(kw, kb, out_f, in_f):
        bound = 1.0 / jnp.sqrt(jnp.float32(in_f))
        w = jax.random.uniform(kw, (out_f, in_f), jnp.float32, -bound, bound)
        b = jax.random.uniform(kb, (out_f,), jnp.float32, -bound, bound)
        return w, b

    w_i2h, b_i2h = lin(ks[0], ks[1], hidden_size, c_in)
    w_i2o, b_i2o = lin(ks[2], ks[3], output_size, c_in)
    w_o2o, b_o2o = lin(ks[4], ks[5], output_size, oc_in)
    return dict(w_i2h=w_i2h, b_i2h=b_i2h, w_i2o=w_i2o, b_i2o=b_i2o,
                w_o2o=w_o2o, b_o2o=b_o2o)


def prepare_params(params, n_categories, input_size, hidden_size, output_size):
    """One-time: transpose, split by input-row block, pad to (8,128)-friendly shapes."""
    C = n_categories + input_size          # width of [category | input]
    H, O = hidden_size, output_size
    C_pad = max(_round_up(C, LANE), LANE)
    H_pad = max(_round_up(H, LANE), LANE)
    O_pad = max(_round_up(O, LANE), LANE)

    def pad2(a, rows, cols):
        return jnp.zeros((rows, cols), jnp.float32).at[:a.shape[0], :a.shape[1]].set(a)

    w_i2h_t = params["w_i2h"].T            # (C+H, H)
    w_i2o_t = params["w_i2o"].T            # (C+H, O)
    w_o2o = params["w_o2o"]                # (O, H+O)

    return dict(
        C=C, H=H, O=O, C_pad=C_pad, H_pad=H_pad, O_pad=O_pad,
        wx_h=pad2(w_i2h_t[:C], C_pad, H_pad),
        wh_h=pad2(w_i2h_t[C:], H_pad, H_pad),
        b_h=pad2(params["b_i2h"][None, :], 1, H_pad),
        wx_o=pad2(w_i2o_t[:C], C_pad, O_pad),
        wh_o=pad2(w_i2o_t[C:], H_pad, O_pad),
        b_o=pad2(params["b_i2o"][None, :], 1, O_pad),
        woo_h=pad2(w_o2o[:, :H].T, H_pad, O_pad),
        woo_o=pad2(w_o2o[:, H:].T, O_pad, O_pad),
        b_oo=jnp.full((1, O_pad), NEG_BIG, jnp.float32).at[0, :O].set(params["b_o2o"]),
    )


# ----------------------------------------------------------------------------- wrappers
def rnn_sequence(category, x_seq, hidden0, prepped):
    """Run the RNN over a whole sequence in ONE pallas_call (grid over time).

    category: (B, n_categories)   (constant per sequence, as in the tutorial)
    x_seq:    (T, B, input_size)
    hidden0:  (B, hidden_size)
    returns:  (log_probs (T, B, output_size), final hidden (B, hidden_size))
    """
    T, B, _ = x_seq.shape
    C, H, O = prepped["C"], prepped["H"], prepped["O"]
    C_pad, H_pad, O_pad = prepped["C_pad"], prepped["H_pad"], prepped["O_pad"]
    B_pad = max(_round_up(B, SUBLANE), SUBLANE)

    # Build the padded [category | input] slab once for the whole sequence.
    cx = jnp.concatenate(
        [jnp.broadcast_to(category[None], (T,) + category.shape), x_seq], axis=-1)
    x_p = jnp.zeros((T, B_pad, C_pad), jnp.float32).at[:, :B, :C].set(cx)
    h0_p = jnp.zeros((B_pad, H_pad), jnp.float32).at[:B, :H].set(hidden0)

    def resident(shape):                       # weight stays in VMEM for all steps
        return pl.BlockSpec(shape, lambda t: (0,) * len(shape))

    out_p, hid_p = pl.pallas_call(
        rnn_seq_kernel,
        out_shape=(jax.ShapeDtypeStruct((T, B_pad, O_pad), jnp.float32),
                   jax.ShapeDtypeStruct((B_pad, H_pad), jnp.float32)),
        grid=(T,),
        in_specs=[
            pl.BlockSpec((None, B_pad, C_pad), lambda t: (t, 0, 0)),   # x per step
            resident((B_pad, H_pad)),                                  # h0
            resident((C_pad, H_pad)), resident((H_pad, H_pad)), resident((1, H_pad)),
            resident((C_pad, O_pad)), resident((H_pad, O_pad)), resident((1, O_pad)),
            resident((H_pad, O_pad)), resident((O_pad, O_pad)), resident((1, O_pad)),
        ],
        out_specs=(pl.BlockSpec((None, B_pad, O_pad), lambda t: (t, 0, 0)),
                   pl.BlockSpec((B_pad, H_pad), lambda t: (0, 0))),
        compiler_params=pltpu.CompilerParams(
            dimension_semantics=("arbitrary",)),       # time axis is a recurrence
    )(x_p, h0_p,
      prepped["wx_h"], prepped["wh_h"], prepped["b_h"],
      prepped["wx_o"], prepped["wh_o"], prepped["b_o"],
      prepped["woo_h"], prepped["woo_o"], prepped["b_oo"])

    return out_p[:, :B, :O], hid_p[:B, :H]


def rnn_forward(category, inp, hidden, prepped):
    """Exact one-step module forward: returns (log_softmax(output), hidden)."""
    out_seq, h_new = rnn_sequence(category, inp[None], hidden, prepped)
    return out_seq[0], h_new


# ----------------------------------------------------------------------------- reference
def rnn_reference_step(category, inp, hidden, params):
    """Pure-JAX single-step reference (eval-mode dropout = identity)."""
    comb = jnp.concatenate([category, inp, hidden], axis=1)
    h = comb @ params["w_i2h"].T + params["b_i2h"]
    o = comb @ params["w_i2o"].T + params["b_i2o"]
    oc = jnp.concatenate([h, o], axis=1)
    logits = oc @ params["w_o2o"].T + params["b_o2o"]
    return jax.nn.log_softmax(logits, axis=1), h


if __name__ == "__main__":
    n_categories = 0          # all_categories == [] in the reference script
    input_size = 16
    hidden_size = 32
    output_size = 16
    batch = 2
    seq_len = 8

    key = jax.random.PRNGKey(0)
    kp, kc, ki, kh = jax.random.split(key, 4)
    params = init_params(kp, n_categories, input_size, hidden_size, output_size)
    prepped = prepare_params(params, n_categories, input_size, hidden_size, output_size)

    category = jax.random.normal(kc, (batch, n_categories), jnp.float32)
    x_seq = jax.random.normal(ki, (seq_len, batch, input_size), jnp.float32)
    h0 = jnp.zeros((batch, hidden_size), jnp.float32)   # RNN.initHidden(), batched

    # Fused full-sequence kernel.
    out_seq, h_final = rnn_sequence(category, x_seq, h0, prepped)
    out_seq = jax.block_until_ready(out_seq)
    h_final = jax.block_until_ready(h_final)

    # Reference: loop the module forward over the sequence.
    h_ref = h0
    ref_outs = []
    for t in range(seq_len):
        o_ref, h_ref = rnn_reference_step(category, x_seq[t], h_ref, params)
        ref_outs.append(o_ref)
    ref_out_seq = jnp.stack(ref_outs)

    assert jnp.allclose(out_seq, ref_out_seq, atol=1e-4, rtol=1e-4), \
        float(jnp.max(jnp.abs(out_seq - ref_out_seq)))
    assert jnp.allclose(h_final, h_ref, atol=1e-4, rtol=1e-4), \
        float(jnp.max(jnp.abs(h_final - h_ref)))

    # Single-step module semantics also hold.
    out1, h1 = rnn_forward(category, x_seq[0], h0, prepped)
    ref1, refh1 = rnn_reference_step(category, x_seq[0], h0, params)
    assert jnp.allclose(out1, ref1, atol=1e-4, rtol=1e-4)
    assert jnp.allclose(h1, refh1, atol=1e-4, rtol=1e-4)

    print("KERNEL_OK")
</pallas_src>

<mosaic_0001>
module attributes {stable_mosaic.version = 11 : i64} {
  func.func @rnn_seq_kernel(%arg0: i32, %arg1: memref<1x8x128xf32, #tpu.memory_space<vmem>>, %arg2: memref<8x128xf32, #tpu.memory_space<vmem>>, %arg3: memref<128x128xf32, #tpu.memory_space<vmem>>, %arg4: memref<128x128xf32, #tpu.memory_space<vmem>>, %arg5: memref<1x128xf32, #tpu.memory_space<vmem>>, %arg6: memref<128x128xf32, #tpu.memory_space<vmem>>, %arg7: memref<128x128xf32, #tpu.memory_space<vmem>>, %arg8: memref<1x128xf32, #tpu.memory_space<vmem>>, %arg9: memref<128x128xf32, #tpu.memory_space<vmem>>, %arg10: memref<128x128xf32, #tpu.memory_space<vmem>>, %arg11: memref<1x128xf32, #tpu.memory_space<vmem>>, %arg12: memref<1x8x128xf32, #tpu.memory_space<vmem>>, %arg13: memref<8x128xf32, #tpu.memory_space<vmem>>) attributes {dimension_semantics = [#tpu.dimension_semantics<arbitrary>], iteration_bounds = array<i64: 8>, scalar_prefetch = 0 : i64, scratch_operands = 0 : i64, tpu.core_type = #tpu.core_type<tc>, window_params = [{transform_indices = @transform_0, window_bounds = array<i64: 1, 8, 128>}, {pipeline_mode = #tpu.pipeline_mode<synchronous>, transform_indices = @transform_1, window_bounds = array<i64: 8, 128>}, {pipeline_mode = #tpu.pipeline_mode<synchronous>, transform_indices = @transform_2, window_bounds = array<i64: 128, 128>}, {pipeline_mode = #tpu.pipeline_mode<synchronous>, transform_indices = @transform_3, window_bounds = array<i64: 128, 128>}, {pipeline_mode = #tpu.pipeline_mode<synchronous>, transform_indices = @transform_4, window_bounds = array<i64: 1, 128>}, {pipeline_mode = #tpu.pipeline_mode<synchronous>, transform_indices = @transform_5, window_bounds = array<i64: 128, 128>}, {pipeline_mode = #tpu.pipeline_mode<synchronous>, transform_indices = @transform_6, window_bounds = array<i64: 128, 128>}, {pipeline_mode = #tpu.pipeline_mode<synchronous>, transform_indices = @transform_7, window_bounds = array<i64: 1, 128>}, {pipeline_mode = #tpu.pipeline_mode<synchronous>, transform_indices = @transform_8, window_bounds = array<i64: 128, 128>}, {pipeline_mode = #tpu.pipeline_mode<synchronous>, transform_indices = @transform_9, window_bounds = array<i64: 128, 128>}, {pipeline_mode = #tpu.pipeline_mode<synchronous>, transform_indices = @transform_10, window_bounds = array<i64: 1, 128>}, {transform_indices = @transform_11, window_bounds = array<i64: 1, 8, 128>}, {pipeline_mode = #tpu.pipeline_mode<synchronous>, transform_indices = @transform_12, window_bounds = array<i64: 8, 128>}]} {
    %c0_i32 = arith.constant 0 : i32
    %0 = arith.cmpi eq, %arg0, %c0_i32 : i32
    %1 = arith.extui %0 : i1 to i32
    %c0_i32_0 = arith.constant 0 : i32
    %2 = arith.cmpi ne, %1, %c0_i32_0 : i32
    scf.if %2 {
      %c0_35 = arith.constant 0 : index
      %c0_36 = arith.constant 0 : index
      %44 = vector.load %arg2[%c0_35, %c0_36] : memref<8x128xf32, #tpu.memory_space<vmem>>, vector<8x128xf32>
      %c0_37 = arith.constant 0 : index
      %c0_38 = arith.constant 0 : index
      %45 = vector.load %arg13[%c0_37, %c0_38] : memref<8x128xf32, #tpu.memory_space<vmem>>, vector<8x128xf32>
      tpu.vector_store %arg13[%c0_37, %c0_38], %44 {strides = array<i32>} : memref<8x128xf32, #tpu.memory_space<vmem>>, vector<8x128xf32>,
    } else {
    }
    %c0 = arith.constant 0 : index
    %c0_1 = arith.constant 0 : index
    %c0_2 = arith.constant 0 : index
    %3 = vector.load %arg1[%c0, %c0_1, %c0_2] : memref<1x8x128xf32, #tpu.memory_space<vmem>>, vector<1x8x128xf32>
    %4 = vector.shape_cast %3 : vector<1x8x128xf32> to vector<8x128xf32>
    %c0_3 = arith.constant 0 : index
    %c0_4 = arith.constant 0 : index
    %5 = vector.load %arg13[%c0_3, %c0_4] : memref<8x128xf32, #tpu.memory_space<vmem>>, vector<8x128xf32>
    %c0_5 = arith.constant 0 : index
    %c0_6 = arith.constant 0 : index
    %6 = vector.load %arg3[%c0_5, %c0_6] : memref<128x128xf32, #tpu.memory_space<vmem>>, vector<128x128xf32>
    %cst = arith.constant dense<0.000000e+00> : vector<8x128xf32>
    %7 = tpu.matmul %4, %6, %cst {dimension_numbers = #tpu.dot_dimension_numbers<[1], [0], [0], [1], [0, 0, 1, 1], [], []>} : vector<8x128xf32>, vector<128x128xf32>, vector<8x128xf32> -> vector<8x128xf32>
    %c0_7 = arith.constant 0 : index
    %c0_8 = arith.constant 0 : index
    %8 = vector.load %arg4[%c0_7, %c0_8] : memref<128x128xf32, #tpu.memory_space<vmem>>, vector<128x128xf32>
    %cst_9 = arith.constant dense<0.000000e+00> : vector<8x128xf32>
    %9 = tpu.matmul %5, %8, %cst_9 {dimension_numbers = #tpu.dot_dimension_numbers<[1], [0], [0], [1], [0, 0, 1, 1], [], []>} : vector<8x128xf32>, vector<128x128xf32>, vector<8x128xf32> -> vector<8x128xf32>
    %10 = arith.addf %7, %9 : vector<8x128xf32>
    %c0_10 = arith.constant 0 : index
    %c0_11 = arith.constant 0 : index
    %11 = vector.load %arg5[%c0_10, %c0_11] : memref<1x128xf32, #tpu.memory_space<vmem>>, vector<1x128xf32>
    %12 = vector.broadcast %11 : vector<1x128xf32> to vector<8x128xf32>
    %13 = arith.addf %10, %12 : vector<8x128xf32>
    %c0_12 = arith.constant 0 : index
    %c0_13 = arith.constant 0 : index
    %14 = vector.load %arg6[%c0_12, %c0_13] : memref<128x128xf32, #tpu.memory_space<vmem>>, vector<128x128xf32>
    %cst_14 = arith.constant dense<0.000000e+00> : vector<8x128xf32>
    %15 = tpu.matmul %4, %14, %cst_14 {dimension_numbers = #tpu.dot_dimension_numbers<[1], [0], [0], [1], [0, 0, 1, 1], [], []>} : vector<8x128xf32>, vector<128x128xf32>, vector<8x128xf32> -> vector<8x128xf32>
    %c0_15 = arith.constant 0 : index
    %c0_16 = arith.constant 0 : index
    %16 = vector.load %arg7[%c0_15, %c0_16] : memref<128x128xf32, #tpu.memory_space<vmem>>, vector<128x128xf32>
    %cst_17 = arith.constant dense<0.000000e+00> : vector<8x128xf32>
    %17 = tpu.matmul %5, %16, %cst_17 {dimension_numbers = #tpu.dot_dimension_numbers<[1], [0], [0], [1], [0, 0, 1, 1], [], []>} : vector<8x128xf32>, vector<128x128xf32>, vector<8x128xf32> -> vector<8x128xf32>
    %18 = arith.addf %15, %17 : vector<8x128xf32>
    %c0_18 = arith.constant 0 : index
    %c0_19 = arith.constant 0 : index
    %19 = vector.load %arg8[%c0_18, %c0_19] : memref<1x128xf32, #tpu.memory_space<vmem>>, vector<1x128xf32>
    %20 = vector.broadcast %19 : vector<1x128xf32> to vector<8x128xf32>
    %21 = arith.addf %18, %20 : vector<8x128xf32>
    %c0_20 = arith.constant 0 : index
    %c0_21 = arith.constant 0 : index
    %22 = vector.load %arg9[%c0_20, %c0_21] : memref<128x128xf32, #tpu.memory_space<vmem>>, vector<128x128xf32>
    %cst_22 = arith.constant dense<0.000000e+00> : vector<8x128xf32>
    %23 = tpu.matmul %13, %22, %cst_22 {dimension_numbers = #tpu.dot_dimension_numbers<[1], [0], [0], [1], [0, 0, 1, 1], [], []>} : vector<8x128xf32>, vector<128x128xf32>, vector<8x128xf32> -> vector<8x128xf32>
    %c0_23 = arith.constant 0 : index
    %c0_24 = arith.constant 0 : index
    %24 = vector.load %arg10[%c0_23, %c0_24] : memref<128x128xf32, #tpu.memory_space<vmem>>, vector<128x128xf32>
    %cst_25 = arith.constant dense<0.000000e+00> : vector<8x128xf32>
    %25 = tpu.matmul %21, %24, %cst_25 {dimension_numbers = #tpu.dot_dimension_numbers<[1], [0], [0], [1], [0, 0, 1, 1], [], []>} : vector<8x128xf32>, vector<128x128xf32>, vector<8x128xf32> -> vector<8x128xf32>
    %26 = arith.addf %23, %25 : vector<8x128xf32>
    %c0_26 = arith.constant 0 : index
    %c0_27 = arith.constant 0 : index
    %27 = vector.load %arg11[%c0_26, %c0_27] : memref<1x128xf32, #tpu.memory_space<vmem>>, vector<1x128xf32>
    %28 = vector.broadcast %27 : vector<1x128xf32> to vector<8x128xf32>
    %29 = arith.addf %26, %28 : vector<8x128xf32>
    %cst_28 = arith.constant dense<0xFF800000> : vector<8xf32>
    %30 = vector.multi_reduction <maximumf>, %29, %cst_28 [1] : vector<8x128xf32> to vector<8xf32>
    %31 = vector.shape_cast %30 : vector<8xf32> to vector<8x1xf32>
    %32 = vector.broadcast %31 : vector<8x1xf32> to vector<8x128xf32>
    %33 = arith.subf %29, %32 : vector<8x128xf32>
    %34 = math.exp %33 : vector<8x128xf32>
    %cst_29 = arith.constant dense<0.000000e+00> : vector<8xf32>
    %35 = vector.multi_reduction <add>, %34, %cst_29 [1] : vector<8x128xf32> to vector<8xf32>
    %36 = vector.shape_cast %35 : vector<8xf32> to vector<8x1xf32>
    %37 = math.log %36 : vector<8x1xf32>
    %38 = vector.broadcast %37 : vector<8x1xf32> to vector<8x128xf32>
    %39 = arith.subf %33, %38 : vector<8x128xf32>
    %c0_30 = arith.constant 0 : index
    %c0_31 = arith.constant 0 : index
    %c0_32 = arith.constant 0 : index
    %40 = vector.load %arg12[%c0_30, %c0_31, %c0_32] : memref<1x8x128xf32, #tpu.memory_space<vmem>>, vector<1x8x128xf32>
    %41 = vector.shape_cast %40 : vector<1x8x128xf32> to vector<8x128xf32>
    %42 = vector.shape_cast %39 : vector<8x128xf32> to vector<1x8x128xf32>
    tpu.vector_store %arg12[%c0_30, %c0_31, %c0_32], %42 {strides = array<i32>} : memref<1x8x128xf32, #tpu.memory_space<vmem>>, vector<1x8x128xf32>,
    %c0_33 = arith.constant 0 : index
    %c0_34 = arith.constant 0 : index
    %43 = vector.load %arg13[%c0_33, %c0_34] : memref<8x128xf32, #tpu.memory_space<vmem>>, vector<8x128xf32>
    tpu.vector_store %arg13[%c0_33, %c0_34], %13 {strides = array<i32>} : memref<8x128xf32, #tpu.memory_space<vmem>>, vector<8x128xf32>,
    return
  }
  func.func @transform_0(%arg0: i32) -> (i32, i32, i32) {
    %c0_i32 = arith.constant 0 : i32
    %c0_i32_0 = arith.constant 0 : i32
    %c0_i32_1 = arith.constant 0 : i32
    return %arg0, %c0_i32, %c0_i32_0 : i32, i32, i32
  }
  func.func @transform_1(%arg0: i32) -> (i32, i32) {
    %c0_i32 = arith.constant 0 : i32
    %c0_i32_0 = arith.constant 0 : i32
    %c0_i32_1 = arith.constant 0 : i32
    return %c0_i32, %c0_i32_0 : i32, i32
  }
  func.func @transform_2(%arg0: i32) -> (i32, i32) {
    %c0_i32 = arith.constant 0 : i32
    %c0_i32_0 = arith.constant 0 : i32
    %c0_i32_1 = arith.constant 0 : i32
    return %c0_i32, %c0_i32_0 : i32, i32
  }
  func.func @transform_3(%arg0: i32) -> (i32, i32) {
    %c0_i32 = arith.constant 0 : i32
    %c0_i32_0 = arith.constant 0 : i32
    %c0_i32_1 = arith.constant 0 : i32
    return %c0_i32, %c0_i32_0 : i32, i32
  }
  func.func @transform_4(%arg0: i32) -> (i32, i32) {
    %c0_i32 = arith.constant 0 : i32
    %c0_i32_0 = arith.constant 0 : i32
    %c0_i32_1 = arith.constant 0 : i32
    return %c0_i32, %c0_i32_0 : i32, i32
  }
  func.func @transform_5(%arg0: i32) -> (i32, i32) {
    %c0_i32 = arith.constant 0 : i32
    %c0_i32_0 = arith.constant 0 : i32
    %c0_i32_1 = arith.constant 0 : i32
    return %c0_i32, %c0_i32_0 : i32, i32
  }
  func.func @transform_6(%arg0: i32) -> (i32, i32) {
    %c0_i32 = arith.constant 0 : i32
    %c0_i32_0 = arith.constant 0 : i32
    %c0_i32_1 = arith.constant 0 : i32
    return %c0_i32, %c0_i32_0 : i32, i32
  }
  func.func @transform_7(%arg0: i32) -> (i32, i32) {
    %c0_i32 = arith.constant 0 : i32
    %c0_i32_0 = arith.constant 0 : i32
    %c0_i32_1 = arith.constant 0 : i32
    return %c0_i32, %c0_i32_0 : i32, i32
  }
  func.func @transform_8(%arg0: i32) -> (i32, i32) {
    %c0_i32 = arith.constant 0 : i32
    %c0_i32_0 = arith.constant 0 : i32
    %c0_i32_1 = arith.constant 0 : i32
    return %c0_i32, %c0_i32_0 : i32, i32
  }
  func.func @transform_9(%arg0: i32) -> (i32, i32) {
    %c0_i32 = arith.constant 0 : i32
    %c0_i32_0 = arith.constant 0 : i32
    %c0_i32_1 = arith.constant 0 : i32
    return %c0_i32, %c0_i32_0 : i32, i32
  }
  func.func @transform_10(%arg0: i32) -> (i32, i32) {
    %c0_i32 = arith.constant 0 : i32
    %c0_i32_0 = arith.constant 0 : i32
    %c0_i32_1 = arith.constant 0 : i32
    return %c0_i32, %c0_i32_0 : i32, i32
  }
  func.func @transform_11(%arg0: i32) -> (i32, i32, i32) {
    %c0_i32 = arith.constant 0 : i32
    %c0_i32_0 = arith.constant 0 : i32
    %c0_i32_1 = arith.constant 0 : i32
    return %arg0, %c0_i32, %c0_i32_0 : i32, i32, i32
  }
  func.func @transform_12(%arg0: i32) -> (i32, i32) {
    %c0_i32 = arith.constant 0 : i32
    %c0_i32_0 = arith.constant 0 : i32
    %c0_i32_1 = arith.constant 0 : i32
    return %c0_i32, %c0_i32_0 : i32, i32
  }
}

</mosaic_0001>

<llo_original>
// kernel: tpu_custom_call.1
$region0: #{tpu_custom_call.1}
  #allocation0 [shape = 'u32[]', space=smem, size = 0x4, offset = 0x4, fixed_abs, tag = 'smem constant byte address 0x4 - core index']
  #allocation1 [shape = 'u32[144,128]{1,0:T(1,128)}', space=vmem, size = 0x12000, scoped, tag = 'internal scratch']
  %s0 = inlined_call_operand.hbm [shape: f32[8,8,128], index: 0, kind: input, shape index: {}]
  %s1 = inlined_call_operand.hbm [shape: f32[8,128], index: 1, kind: input, shape index: {}]
  %s2 = inlined_call_operand.hbm [shape: f32[128,128], index: 2, kind: input, shape index: {}]
  %s3 = inlined_call_operand.hbm [shape: f32[128,128], index: 3, kind: input, shape index: {}]
  %s4 = inlined_call_operand.vmem [shape: f32[1,128], index: 4, kind: input, shape index: {}]
  %s5 = inlined_call_operand.hbm [shape: f32[128,128], index: 5, kind: input, shape index: {}]
  %s6 = inlined_call_operand.hbm [shape: f32[128,128], index: 6, kind: input, shape index: {}]
  %s7 = inlined_call_operand.vmem [shape: f32[1,128], index: 7, kind: input, shape index: {}]
  %s8 = inlined_call_operand.hbm [shape: f32[128,128], index: 8, kind: input, shape index: {}]
  %s9 = inlined_call_operand.hbm [shape: f32[128,128], index: 9, kind: input, shape index: {}]
  %s10 = inlined_call_operand.vmem [shape: f32[1,128], index: 10, kind: input, shape index: {}]
  %s11 = inlined_call_operand.hbm [shape: f32[8,8,128], index: 11, kind: output, shape index: {0}]
  %s12 = inlined_call_operand.hbm [shape: f32[8,128], index: 12, kind: output, shape index: {1}]
  %13 = xla_tuple %s11, %s12
  %s14 = sld [smem:[#allocation0]]
  $region121: #{tpu_custom_call.1} parent=0
    _
  %s16 = ssub.s32 1, %s14
  %s17 = scalar_select 0, %s16, %s14
  $region1: #{tpu_custom_call.1} parent=0
    #allocation2 [shape = 'u8[8192]{0}', space=vmem, size = 0x2000, scoped, tag = 'input window, operand 0']
    #allocation3 [shape = 's32[2]{0}', space=sflag, size = 0x8, scoped, tag = 'scoped memory for tpu_custom_call.1']
    #allocation4 [shape = 's32[2]{0}', space=sflag, size = 0x8, scoped, tag = 'scoped memory for tpu_custom_call.1']
    #allocation5 [shape = 'u8[4096]{0}', space=vmem, size = 0x1000, scoped, tag = 'input window, operand 1, single buffered']
    #allocation6 [shape = 's32[1]{0}', space=sflag, size = 0x4, scoped, tag = 'scoped memory for tpu_custom_call.1']
    #allocation7 [shape = 'u8[65536]{0}', space=vmem, size = 0x10000, scoped, tag = 'input window, operand 2, single buffered']
    #allocation8 [shape = 'u8[65536]{0}', space=vmem, size = 0x10000, scoped, tag = 'input window, operand 3, single buffered']
    #allocation9 [shape = 's32[1]{0}', space=sflag, size = 0x4, scoped, tag = 'scoped memory for tpu_custom_call.1']
    #allocation10 [shape = 'u8[65536]{0}', space=vmem, size = 0x10000, scoped, tag = 'input window, operand 5, single buffered']
    #allocation11 [shape = 'u8[65536]{0}', space=vmem, size = 0x10000, scoped, tag = 'input window, operand 6, single buffered']
    #allocation12 [shape = 's32[1]{0}', space=sflag, size = 0x4, scoped, tag = 'scoped memory for tpu_custom_call.1']
    #allocation13 [shape = 'u8[65536]{0}', space=vmem, size = 0x10000, scoped, tag = 'input window, operand 8, single buffered']
    #allocation14 [shape = 'u8[65536]{0}', space=vmem, size = 0x10000, scoped, tag = 'input window, operand 9, single buffered']
    #allocation15 [shape = 's32[1]{0}', space=sflag, size = 0x4, scoped, tag = 'scoped memory for tpu_custom_call.1']
    #allocation16 [shape = 'u8[8192]{0}', space=vmem, size = 0x2000, scoped, tag = 'output window, operand 0']
    #allocation17 [shape = 'u8[4096]{0}', space=vmem, size = 0x1000, scoped, tag = 'output window, operand 1, single buffered']
    #allocation18 [shape = 's32[1]{0}', space=sflag, size = 0x4, scoped, tag = 'scoped memory for tpu_custom_call.1']
    %18 = vsyncpa [#allocation3], 0
    %s19 = scalar_lea.sflag [#allocation3], 1
    %20 = vsyncpa %s19, 0
    %21 = vsyncpa [#allocation6], 0
    %22 = vsyncpa [#allocation9], 0
    %23 = vsyncpa [#allocation12], 0
    %24 = vsyncpa [#allocation15], 0
    %25 = vsyncpa [#allocation4], 0
    %s26 = scalar_lea.sflag [#allocation4], 1
    %27 = vsyncpa %s26, 0
    %28 = vsyncpa [#allocation18], 0
    loop: start=0, step=1, limit=10
    $region2: #{tpu_custom_call.1} parent=1 // loop_pre_header
      _
    $region3: #{tpu_custom_call.1} parent=1 // loop_header
      %s30 = sphi 0, %s34
      %p31 = scmp.ge.s32.totalorder %s30, 10
      %s40 = sphi 0, %s42
      %s43 = sphi 0, %s40
      %s44 = sphi 0, %s43
      %s60 = sphi 0, %s44
      %s64 = sphi 0, %s64
      %s66 = sphi 0, %s64
      %s67 = sphi 0, %s66
      %s81 = sphi 0, %s67
      %s85 = sphi 0, %s85
      %s87 = sphi 0, %s85
      %s88 = sphi 0, %s87
      %s102 = sphi 0, %s88
      %s106 = sphi 0, %s106
      %s108 = sphi 0, %s106
      %s109 = sphi 0, %s108
      %s123 = sphi 0, %s109
      %s127 = sphi 0, %s127
      %s129 = sphi 0, %s127
      %s130 = sphi 0, %s129
      %s144 = sphi 0, %s130
      %s148 = sphi 0, %s148
      %s150 = sphi 0, %s148
      %s151 = sphi 0, %s150
      %s165 = sphi 0, %s151
      %s169 = sphi 0, %s169
      %s171 = sphi 0, %s169
      %s172 = sphi 0, %s171
      %s186 = sphi 0, %s172
      %s190 = sphi 0, %s190
      %s192 = sphi 0, %s190
      %s193 = sphi 0, %s192
      %s207 = sphi 0, %s193
      %s211 = sphi 0, %s211
      %s213 = sphi 0, %s211
      %s214 = sphi 0, %s213
      %s228 = sphi 0, %s214
      %s232 = sphi 0, %s232
      %s234 = sphi 0, %s232
      %s235 = sphi 0, %s234
      %s249 = sphi 0, %s235
      %s253 = sphi 0, %s253
      %s255 = sphi 0, %s253
      %s256 = sphi 0, %s255
      %s270 = sphi 0, %s256
      %s276 = sphi 0, %s278
      %s279 = sphi 0, %s276
      %s280 = sphi 0, %s279
      %s296 = sphi 0, %s280
      %s300 = sphi 0, %s300
      %s302 = sphi 0, %s300
      %s303 = sphi 0, %s302
      %s317 = sphi 0, %s303
    $region4: #{tpu_custom_call.1} parent=1 // loop_header_branch
      %33 = sbr.rel (%p31) target = $region8
    $region5: #{tpu_custom_call.1} parent=1 // loop_body
      %s35 = ssub.s32 %s30, 1
      %s36 = ssub.s32 %s30, 2
      %s37 = sadd.s32 %s30, 1
      %s38 = ssub.s32 %s30, %s37
      %p39 = scmp.eq.s32.totalorder %s38, 0
      %s41 = sadd.s32 %s40, 1
      %s42 = scalar_select %p39, %s40, %s41
      %p45 = pneg %p39
      %p46 = scmp.eq.s32.totalorder %s30, 7
      %p47 = por %p45, %p46
      %p48 = scmp.ne.s32.totalorder %s40, %s43
      %p49 = scmp.eq.s32.totalorder %s30, 0
      %p50 = por %p48, %p49
      %p51 = scmp.ne.s32.totalorder %s40, %s43
      %p52 = scmp.eq.s32.totalorder %s35, 7
      %p53 = por %p51, %p52
      %p54 = scmp.ne.s32.totalorder %s43, %s44
      %p55 = scmp.eq.s32.totalorder %s35, 0
      %p56 = por %p54, %p55
      %p57 = scmp.ne.s32.totalorder %s43, %s44
      %p58 = scmp.eq.s32.totalorder %s36, 7
      %p59 = por %p57, %p58
      %p61 = scmp.ne.s32.totalorder %s44, %s60
      %p62 = scmp.eq.s32.totalorder %s36, 0
      %p63 = por %p61, %p62
      %s65 = sadd.s32 %s64, 1
      %p68 = scmp.eq.s32.totalorder %s30, 7
      %p69 = scmp.ne.s32.totalorder %s64, %s66
      %p70 = scmp.eq.s32.totalorder %s30, 0
      %p71 = por %p69, %p70
      %p72 = scmp.ne.s32.totalorder %s64, %s66
      %p73 = scmp.eq.s32.totalorder %s35, 7
      %p74 = por %p72, %p73
      %p75 = scmp.ne.s32.totalorder %s66, %s67
      %p76 = scmp.eq.s32.totalorder %s35, 0
      %p77 = por %p75, %p76
      %p78 = scmp.ne.s32.totalorder %s66, %s67
      %p79 = scmp.eq.s32.totalorder %s36, 7
      %p80 = por %p78, %p79
      %p82 = scmp.ne.s32.totalorder %s67, %s81
      %p83 = scmp.eq.s32.totalorder %s36, 0
      %p84 = por %p82, %p83
      %s86 = sadd.s32 %s85, 1
      %p89 = scmp.eq.s32.totalorder %s30, 7
      %p90 = scmp.ne.s32.totalorder %s85, %s87
      %p91 = scmp.eq.s32.totalorder %s30, 0
      %p92 = por %p90, %p91
      %p93 = scmp.ne.s32.totalorder %s85, %s87
      %p94 = scmp.eq.s32.totalorder %s35, 7
      %p95 = por %p93, %p94
      %p96 = scmp.ne.s32.totalorder %s87, %s88
      %p97 = scmp.eq.s32.totalorder %s35, 0
      %p98 = por %p96, %p97
      %p99 = scmp.ne.s32.totalorder %s87, %s88
      %p100 = scmp.eq.s32.totalorder %s36, 7
      %p101 = por %p99, %p100
      %p103 = scmp.ne.s32.totalorder %s88, %s102
      %p104 = scmp.eq.s32.totalorder %s36, 0
      %p105 = por %p103, %p104
      %s107 = sadd.s32 %s106, 1
      %p110 = scmp.eq.s32.totalorder %s30, 7
      %p111 = scmp.ne.s32.totalorder %s106, %s108
      %p112 = scmp.eq.s32.totalorder %s30, 0
      %p113 = por %p111, %p112
      %p114 = scmp.ne.s32.totalorder %s106, %s108
      %p115 = scmp.eq.s32.totalorder %s35, 7
      %p116 = por %p114, %p115
      %p117 = scmp.ne.s32.totalorder %s108, %s109
      %p118 = scmp.eq.s32.totalorder %s35, 0
      %p119 = por %p117, %p118
      %p120 = scmp.ne.s32.totalorder %s108, %s109
      %p121 = scmp.eq.s32.totalorder %s36, 7
      %p122 = por %p120, %p121
      %p124 = scmp.ne.s32.totalorder %s109, %s123
      %p125 = scmp.eq.s32.totalorder %s36, 0
      %p126 = por %p124, %p125
      %s128 = sadd.s32 %s127, 1
      %p131 = scmp.eq.s32.totalorder %s30, 7
      %p132 = scmp.ne.s32.totalorder %s127, %s129
      %p133 = scmp.eq.s32.totalorder %s30, 0
      %p134 = por %p132, %p133
      %p135 = scmp.ne.s32.totalorder %s127, %s129
      %p136 = scmp.eq.s32.totalorder %s35, 7
      %p137 = por %p135, %p136
      %p138 = scmp.ne.s32.totalorder %s129, %s130
      %p139 = scmp.eq.s32.totalorder %s35, 0
      %p140 = por %p138, %p139
      %p141 = scmp.ne.s32.totalorder %s129, %s130
      %p142 = scmp.eq.s32.totalorder %s36, 7
      %p143 = por %p141, %p142
      %p145 = scmp.ne.s32.totalorder %s130, %s144
      %p146 = scmp.eq.s32.totalorder %s36, 0
      %p147 = por %p145, %p146
      %s149 = sadd.s32 %s148, 1
      %p152 = scmp.eq.s32.totalorder %s30, 7
      %p153 = scmp.ne.s32.totalorder %s148, %s150
      %p154 = scmp.eq.s32.totalorder %s30, 0
      %p155 = por %p153, %p154
      %p156 = scmp.ne.s32.totalorder %s148, %s150
      %p157 = scmp.eq.s32.totalorder %s35, 7
      %p158 = por %p156, %p157
      %p159 = scmp.ne.s32.totalorder %s150, %s151
      %p160 = scmp.eq.s32.totalorder %s35, 0
      %p161 = por %p159, %p160
      %p162 = scmp.ne.s32.totalorder %s150, %s151
      %p163 = scmp.eq.s32.totalorder %s36, 7
      %p164 = por %p162, %p163
      %p166 = scmp.ne.s32.totalorder %s151, %s165
      %p167 = scmp.eq.s32.totalorder %s36, 0
      %p168 = por %p166, %p167
      %s170 = sadd.s32 %s169, 1
      %p173 = scmp.eq.s32.totalorder %s30, 7
      %p174 = scmp.ne.s32.totalorder %s169, %s171
      %p175 = scmp.eq.s32.totalorder %s30, 0
      %p176 = por %p174, %p175
      %p177 = scmp.ne.s32.totalorder %s169, %s171
      %p178 = scmp.eq.s32.totalorder %s35, 7
      %p179 = por %p177, %p178
      %p180 = scmp.ne.s32.totalorder %s171, %s172
      %p181 = scmp.eq.s32.totalorder %s35, 0
      %p182 = por %p180, %p181
      %p183 = scmp.ne.s32.totalorder %s171, %s172
      %p184 = scmp.eq.s32.totalorder %s36, 7
      %p185 = por %p183, %p184
      %p187 = scmp.ne.s32.totalorder %s172, %s186
      %p188 = scmp.eq.s32.totalorder %s36, 0
      %p189 = por %p187, %p188
      %s191 = sadd.s32 %s190, 1
      %p194 = scmp.eq.s32.totalorder %s30, 7
      %p195 = scmp.ne.s32.totalorder %s190, %s192
      %p196 = scmp.eq.s32.totalorder %s30, 0
      %p197 = por %p195, %p196
      %p198 = scmp.ne.s32.totalorder %s190, %s192
      %p199 = scmp.eq.s32.totalorder %s35, 7
      %p200 = por %p198, %p199
      %p201 = scmp.ne.s32.totalorder %s192, %s193
      %p202 = scmp.eq.s32.totalorder %s35, 0
      %p203 = por %p201, %p202
      %p204 = scmp.ne.s32.totalorder %s192, %s193
      %p205 = scmp.eq.s32.totalorder %s36, 7
      %p206 = por %p204, %p205
      %p208 = scmp.ne.s32.totalorder %s193, %s207
      %p209 = scmp.eq.s32.totalorder %s36, 0
      %p210 = por %p208, %p209
      %s212 = sadd.s32 %s211, 1
      %p215 = scmp.eq.s32.totalorder %s30, 7
      %p216 = scmp.ne.s32.totalorder %s211, %s213
      %p217 = scmp.eq.s32.totalorder %s30, 0
      %p218 = por %p216, %p217
      %p219 = scmp.ne.s32.totalorder %s211, %s213
      %p220 = scmp.eq.s32.totalorder %s35, 7
      %p221 = por %p219, %p220
      %p222 = scmp.ne.s32.totalorder %s213, %s214
      %p223 = scmp.eq.s32.totalorder %s35, 0
      %p224 = por %p222, %p223
      %p225 = scmp.ne.s32.totalorder %s213, %s214
      %p226 = scmp.eq.s32.totalorder %s36, 7
      %p227 = por %p225, %p226
      %p229 = scmp.ne.s32.totalorder %s214, %s228
      %p230 = scmp.eq.s32.totalorder %s36, 0
      %p231 = por %p229, %p230
      %s233 = sadd.s32 %s232, 1
      %p236 = scmp.eq.s32.totalorder %s30, 7
      %p237 = scmp.ne.s32.totalorder %s232, %s234
      %p238 = scmp.eq.s32.totalorder %s30, 0
      %p239 = por %p237, %p238
      %p240 = scmp.ne.s32.totalorder %s232, %s234
      %p241 = scmp.eq.s32.totalorder %s35, 7
      %p242 = por %p240, %p241
      %p243 = scmp.ne.s32.totalorder %s234, %s235
      %p244 = scmp.eq.s32.totalorder %s35, 0
      %p245 = por %p243, %p244
      %p246 = scmp.ne.s32.totalorder %s234, %s235
      %p247 = scmp.eq.s32.totalorder %s36, 7
      %p248 = por %p246, %p247
      %p250 = scmp.ne.s32.totalorder %s235, %s249
      %p251 = scmp.eq.s32.totalorder %s36, 0
      %p252 = por %p250, %p251
      %s254 = sadd.s32 %s253, 1
      %p257 = scmp.eq.s32.totalorder %s30, 7
      %p258 = scmp.ne.s32.totalorder %s253, %s255
      %p259 = scmp.eq.s32.totalorder %s30, 0
      %p260 = por %p258, %p259
      %p261 = scmp.ne.s32.totalorder %s253, %s255
      %p262 = scmp.eq.s32.totalorder %s35, 7
      %p263 = por %p261, %p262
      %p264 = scmp.ne.s32.totalorder %s255, %s256
      %p265 = scmp.eq.s32.totalorder %s35, 0
      %p266 = por %p264, %p265
      %p267 = scmp.ne.s32.totalorder %s255, %s256
      %p268 = scmp.eq.s32.totalorder %s36, 7
      %p269 = por %p267, %p268
      %p271 = scmp.ne.s32.totalorder %s256, %s270
      %p272 = scmp.eq.s32.totalorder %s36, 0
      %p273 = por %p271, %p272
      %s274 = ssub.s32 %s30, %s37
      %p275 = scmp.eq.s32.totalorder %s274, 0
      %s277 = sadd.s32 %s276, 1
      %s278 = scalar_select %p275, %s276, %s277
      %p281 = pneg %p275
      %p282 = scmp.eq.s32.totalorder %s30, 7
      %p283 = por %p281, %p282
      %p284 = scmp.ne.s32.totalorder %s276, %s279
      %p285 = scmp.eq.s32.totalorder %s30, 0
      %p286 = por %p284, %p285
      %p287 = scmp.ne.s32.totalorder %s276, %s279
      %p288 = scmp.eq.s32.totalorder %s35, 7
      %p289 = por %p287, %p288
      %p290 = scmp.ne.s32.totalorder %s279, %s280
      %p291 = scmp.eq.s32.totalorder %s35, 0
      %p292 = por %p290, %p291
      %p293 = scmp.ne.s32.totalorder %s279, %s280
      %p294 = scmp.eq.s32.totalorder %s36, 7
      %p295 = por %p293, %p294
      %p297 = scmp.ne.s32.totalorder %s280, %s296
      %p298 = scmp.eq.s32.totalorder %s36, 0
      %p299 = por %p297, %p298
      %s301 = sadd.s32 %s300, 1
      %p304 = scmp.eq.s32.totalorder %s30, 7
      %p305 = scmp.ne.s32.totalorder %s300, %s302
      %p306 = scmp.eq.s32.totalorder %s30, 0
      %p307 = por %p305, %p306
      %p308 = scmp.ne.s32.totalorder %s300, %s302
      %p309 = scmp.eq.s32.totalorder %s35, 7
      %p310 = por %p308, %p309
      %p311 = scmp.ne.s32.totalorder %s302, %s303
      %p312 = scmp.eq.s32.totalorder %s35, 0
      %p313 = por %p311, %p312
      %p314 = scmp.ne.s32.totalorder %s302, %s303
      %p315 = scmp.eq.s32.totalorder %s36, 7
      %p316 = por %p314, %p315
      %p318 = scmp.ne.s32.totalorder %s303, %s317
      %p319 = scmp.eq.s32.totalorder %s36, 0
      %p320 = por %p318, %p319
      %p321 = scmp.le.s32.totalorder 1, %s30
      %p322 = scmp.lt.s32.totalorder %s30, 9
      %p323 = pnand %p321, %p322
      %p324 = pneg %p323
      // Predicated region
      $region9: #{tpu_custom_call.1} parent=5 // pred_check
        _
      $region10: #{tpu_custom_call.1} parent=5 // pred_check_branch
        %326 = sbr.rel (%p323) target = $region12
      $region11: #{tpu_custom_call.1} parent=5 // pred_region
        %s327 = ssub.s32 %s30, 1
        // Predicated region
        $region13: #{tpu_custom_call.1} parent=11 // pred_check
          %p328 = pneg %p77
        $region14: #{tpu_custom_call.1} parent=11 // pred_check_branch
          %330 = sbr.rel (%p328) target = $region16
        $region15: #{tpu_custom_call.1} parent=11 // pred_region
          %s332 = ssub.s32 128, 128
          %333 = vsyncadd [#allocation6], %s332
          %s335 = sshll.u32 [#allocation5], 4
          %s336 = int_to_ptr.vmem [resolvable:$true] %s335
          %338 = dma.hbm_to_vmem [thread:$0]  %s1, 128, %s336, [#allocation6]
        $region16: #{tpu_custom_call.1} parent=11 // pred_fallthru
          _
        // Predicated region
        $region17: #{tpu_custom_call.1} parent=11 // pred_check
          %p339 = pneg %p98
        $region18: #{tpu_custom_call.1} parent=11 // pred_check_branch
          %341 = sbr.rel (%p339) target = $region20
        $region19: #{tpu_custom_call.1} parent=11 // pred_region
          %s343 = ssub.s32 2048, 2048
          %344 = vsyncadd [#allocation6], %s343
          %s345 = sshll.u32 [#allocation7], 4
          %s346 = int_to_ptr.vmem [resolvable:$true] %s345
          %351 = dma.hbm_to_vmem [thread:$0]  %s2, 2048, %s346, [#allocation6], 128, 128, 8
        $region20: #{tpu_custom_call.1} parent=11 // pred_fallthru
          _
        // Predicated region
        $region21: #{tpu_custom_call.1} parent=11 // pred_check
          %p352 = pneg %p119
        $region22: #{tpu_custom_call.1} parent=11 // pred_check_branch
          %354 = sbr.rel (%p352) target = $region24
        $region23: #{tpu_custom_call.1} parent=11 // pred_region
          %s356 = ssub.s32 2048, 2048
          %357 = vsyncadd [#allocation9], %s356
          %s358 = sshll.u32 [#allocation8], 4
          %s359 = int_to_ptr.vmem [resolvable:$true] %s358
          %364 = dma.hbm_to_vmem [thread:$0]  %s3, 2048, %s359, [#allocation9], 128, 128, 8
        $region24: #{tpu_custom_call.1} parent=11 // pred_fallthru
          _
        // Predicated region
        $region25: #{tpu_custom_call.1} parent=11 // pred_check
          %p365 = pneg %p140
        $region26: #{tpu_custom_call.1} parent=11 // pred_check_branch
          %367 = sbr.rel (%p365) target = $region28
        $region27: #{tpu_custom_call.1} parent=11 // pred_region
          _
        $region28: #{tpu_custom_call.1} parent=11 // pred_fallthru
          _
        // Predicated region
        $region29: #{tpu_custom_call.1} parent=11 // pred_check
          %p368 = pneg %p161
        $region30: #{tpu_custom_call.1} parent=11 // pred_check_branch
          %370 = sbr.rel (%p368) target = $region32
        $region31: #{tpu_custom_call.1} parent=11 // pred_region
          %s372 = ssub.s32 2048, 2048
          %373 = vsyncadd [#allocation9], %s372
          %s374 = sshll.u32 [#allocation10], 4
          %s375 = int_to_ptr.vmem [resolvable:$true] %s374
          %380 = dma.hbm_to_vmem [thread:$0]  %s5, 2048, %s375, [#allocation9], 128, 128, 8
        $region32: #{tpu_custom_call.1} parent=11 // pred_fallthru
          _
        // Predicated region
        $region33: #{tpu_custom_call.1} parent=11 // pred_check
          %p381 = pneg %p182
        $region34: #{tpu_custom_call.1} parent=11 // pred_check_branch
          %383 = sbr.rel (%p381) target = $region36
        $region35: #{tpu_custom_call.1} parent=11 // pred_region
          %s385 = ssub.s32 2048, 2048
          %386 = vsyncadd [#allocation12], %s385
          %s387 = sshll.u32 [#allocation11], 4
          %s388 = int_to_ptr.vmem [resolvable:$true] %s387
          %393 = dma.hbm_to_vmem [thread:$0]  %s6, 2048, %s388, [#allocation12], 128, 128, 8
        $region36: #{tpu_custom_call.1} parent=11 // pred_fallthru
          _
        // Predicated region
        $region37: #{tpu_custom_call.1} parent=11 // pred_check
          %p394 = pneg %p203
        $region38: #{tpu_custom_call.1} parent=11 // pred_check_branch
          %396 = sbr.rel (%p394) target = $region40
        $region39: #{tpu_custom_call.1} parent=11 // pred_region
          _
        $region40: #{tpu_custom_call.1} parent=11 // pred_fallthru
          _
        // Predicated region
        $region41: #{tpu_custom_call.1} parent=11 // pred_check
          %p397 = pneg %p224
        $region42: #{tpu_custom_call.1} parent=11 // pred_check_branch
          %399 = sbr.rel (%p397) target = $region44
        $region43: #{tpu_custom_call.1} parent=11 // pred_region
          %s401 = ssub.s32 2048, 2048
          %402 = vsyncadd [#allocation12], %s401
          %s403 = sshll.u32 [#allocation13], 4
          %s404 = int_to_ptr.vmem [resolvable:$true] %s403
          %409 = dma.hbm_to_vmem [thread:$0]  %s8, 2048, %s404, [#allocation12], 128, 128, 8
        $region44: #{tpu_custom_call.1} parent=11 // pred_fallthru
          _
        // Predicated region
        $region45: #{tpu_custom_call.1} parent=11 // pred_check
          %p410 = pneg %p245
        $region46: #{tpu_custom_call.1} parent=11 // pred_check_branch
          %412 = sbr.rel (%p410) target = $region48
        $region47: #{tpu_custom_call.1} parent=11 // pred_region
          %s414 = ssub.s32 2048, 2048
          %415 = vsyncadd [#allocation15], %s414
          %s416 = sshll.u32 [#allocation14], 4
          %s417 = int_to_ptr.vmem [resolvable:$true] %s416
          %422 = dma.hbm_to_vmem [thread:$0]  %s9, 2048, %s417, [#allocation15], 128, 128, 8
        $region48: #{tpu_custom_call.1} parent=11 // pred_fallthru
          _
        // Predicated region
        $region49: #{tpu_custom_call.1} parent=11 // pred_check
          %p423 = pneg %p266
        $region50: #{tpu_custom_call.1} parent=11 // pred_check_branch
          %425 = sbr.rel (%p423) target = $region52
        $region51: #{tpu_custom_call.1} parent=11 // pred_region
          _
        $region52: #{tpu_custom_call.1} parent=11 // pred_fallthru
          _
      $region12: #{tpu_custom_call.1} parent=5 // pred_fallthru
        _
      %p426 = scmp.lt.s32.totalorder %s30, 8
      // Predicated region
      $region53: #{tpu_custom_call.1} parent=5 // pred_check
        %p427 = pneg %p426
      $region54: #{tpu_custom_call.1} parent=5 // pred_check_branch
        %429 = sbr.rel (%p427) target = $region56
      $region55: #{tpu_custom_call.1} parent=5 // pred_region
        // Predicated region
        $region57: #{tpu_custom_call.1} parent=55 // pred_check
          %p430 = pneg %p50
        $region58: #{tpu_custom_call.1} parent=55 // pred_check_branch
          %432 = sbr.rel (%p430) target = $region60
        $region59: #{tpu_custom_call.1} parent=55 // pred_region
          %s433 = sand.u32 %s40, 1
          %s434 = scalar_lea.sflag [#allocation3], %s433
          %s435 = sand.u32 %s40, 1
          %s436 = smul.addr %s435, 8
          %s437 = scalar_lea.vmem [#allocation2], %s436
          %s439 = ssub.s32 128, 128
          %440 = vsyncadd %s434, %s439
          %s441 = smul.addr %s30, 128
          %s442 = scalar_lea.hbm %s0, %s441
          %s444 = sshll.u32 %s437, 4
          %s445 = int_to_ptr.vmem [resolvable:$true] %s444
          %447 = dma.hbm_to_vmem [thread:$0]  %s442, 128, %s445, %s434
        $region60: #{tpu_custom_call.1} parent=55 // pred_fallthru
          _
      $region56: #{tpu_custom_call.1} parent=5 // pred_fallthru
        _
      %p448 = scmp.le.s32.totalorder 1, %s30
      %p449 = scmp.lt.s32.totalorder %s30, 9
      %p450 = pnand %p448, %p449
      %p451 = pneg %p450
      // Predicated region
      $region61: #{tpu_custom_call.1} parent=5 // pred_check
        _
      $region62: #{tpu_custom_call.1} parent=5 // pred_check_branch
        %453 = sbr.rel (%p450) target = $region64
      $region63: #{tpu_custom_call.1} parent=5 // pred_region
        %s454 = ssub.s32 %s30, 1
        %s455 = sand.u32 %s43, 1
        %s456 = scalar_lea.sflag [#allocation3], %s455
        %s457 = sand.u32 %s43, 1
        %s458 = smul.addr %s457, 8
        %s459 = scalar_lea.vmem [#allocation2], %s458
        // Predicated region
        $region65: #{tpu_custom_call.1} parent=63 // pred_check
          %p460 = pneg %p56
        $region66: #{tpu_custom_call.1} parent=63 // pred_check_branch
          %462 = sbr.rel (%p460) target = $region68
        $region67: #{tpu_custom_call.1} parent=63 // pred_region
          %463 = dma.done %s456, 128
        $region68: #{tpu_custom_call.1} parent=63 // pred_fallthru
          _
        // Predicated region
        $region69: #{tpu_custom_call.1} parent=63 // pred_check
          %p464 = pneg %p77
        $region70: #{tpu_custom_call.1} parent=63 // pred_check_branch
          %466 = sbr.rel (%p464) target = $region72
        $region71: #{tpu_custom_call.1} parent=63 // pred_region
          %467 = dma.done [#allocation6], 128
        $region72: #{tpu_custom_call.1} parent=63 // pred_fallthru
          _
        // Predicated region
        $region73: #{tpu_custom_call.1} parent=63 // pred_check
          %p468 = pneg %p98
        $region74: #{tpu_custom_call.1} parent=63 // pred_check_branch
          %470 = sbr.rel (%p468) target = $region76
        $region75: #{tpu_custom_call.1} parent=63 // pred_region
          %471 = dma.done [#allocation6], 2048
        $region76: #{tpu_custom_call.1} parent=63 // pred_fallthru
          _
        // Predicated region
        $region77: #{tpu_custom_call.1} parent=63 // pred_check
          %p472 = pneg %p119
        $region78: #{tpu_custom_call.1} parent=63 // pred_check_branch
          %474 = sbr.rel (%p472) target = $region80
        $region79: #{tpu_custom_call.1} parent=63 // pred_region
          %475 = dma.done [#allocation9], 2048
        $region80: #{tpu_custom_call.1} parent=63 // pred_fallthru
          _
        // Predicated region
        $region81: #{tpu_custom_call.1} parent=63 // pred_check
          %p476 = pneg %p161
        $region82: #{tpu_custom_call.1} parent=63 // pred_check_branch
          %478 = sbr.rel (%p476) target = $region84
        $region83: #{tpu_custom_call.1} parent=63 // pred_region
          %479 = dma.done [#allocation9], 2048
        $region84: #{tpu_custom_call.1} parent=63 // pred_fallthru
          _
        // Predicated region
        $region85: #{tpu_custom_call.1} parent=63 // pred_check
          %p480 = pneg %p182
        $region86: #{tpu_custom_call.1} parent=63 // pred_check_branch
          %482 = sbr.rel (%p480) target = $region88
        $region87: #{tpu_custom_call.1} parent=63 // pred_region
          %483 = dma.done [#allocation12], 2048
        $region88: #{tpu_custom_call.1} parent=63 // pred_fallthru
          _
        // Predicated region
        $region89: #{tpu_custom_call.1} parent=63 // pred_check
          %p484 = pneg %p224
        $region90: #{tpu_custom_call.1} parent=63 // pred_check_branch
          %486 = sbr.rel (%p484) target = $region92
        $region91: #{tpu_custom_call.1} parent=63 // pred_region
          %487 = dma.done [#allocation12], 2048
        $region92: #{tpu_custom_call.1} parent=63 // pred_fallthru
          _
        // Predicated region
        $region93: #{tpu_custom_call.1} parent=63 // pred_check
          %p488 = pneg %p245
        $region94: #{tpu_custom_call.1} parent=63 // pred_check_branch
          %490 = sbr.rel (%p488) target = $region96
        $region95: #{tpu_custom_call.1} parent=63 // pred_region
          %491 = dma.done [#allocation15], 2048
        $region96: #{tpu_custom_call.1} parent=63 // pred_fallthru
          _
        %s492 = sand.u32 %s43, 1
        %s493 = scalar_lea.sflag [#allocation3], %s492
        %s494 = sand.u32 %s43, 1
        %s495 = smul.addr %s494, 8
        %s496 = scalar_lea.vmem [#allocation2], %s495
        %p497 = pneg %p56
        %p498 = pneg %p53
        %p499 = pneg %p77
        %p500 = pneg %p74
        %p501 = pneg %p98
        %p502 = pneg %p95
        %p503 = pneg %p119
        %p504 = pneg %p116
        %p505 = pneg %p140
        %p506 = pneg %p137
        %p507 = pneg %p161
        %p508 = pneg %p158
        %p509 = pneg %p182
        %p510 = pneg %p179
        %p511 = pneg %p203
        %p512 = pneg %p200
        %p513 = pneg %p224
        %p514 = pneg %p221
        %p515 = pneg %p245
        %p516 = pneg %p242
        %p517 = pneg %p266
        %p518 = pneg %p263
        %p519 = pneg %p292
        %p520 = pneg %p289
        %s521 = sand.u32 %s279, 1
        %s522 = scalar_lea.sflag [#allocation4], %s521
        %s523 = sand.u32 %s279, 1
        %s524 = smul.addr %s523, 8
        %s525 = scalar_lea.vmem [#allocation16], %s524
        %p526 = pneg %p313
        %p527 = pneg %p310
        %p528 = scmp.eq.s32.totalorder %s35, 0
        // Predicated region
        $region97: #{tpu_custom_call.1} parent=63 // pred_check
          %p529 = pneg %p528
        $region98: #{tpu_custom_call.1} parent=63 // pred_check_branch
          %531 = sbr.rel (%p529) target = $region100
        $region99: #{tpu_custom_call.1} parent=63 // pred_region
          %v532 = vld [vmem:[#allocation5] sm:$0xff]
          %533 = vst [vmem:[#allocation17] sm:$0xff] %v532
        $region100: #{tpu_custom_call.1} parent=63 // pred_fallthru
          _
        %v534 = vld [vmem:[%s459] sm:$0xff]
        %v535 = vld [vmem:[#allocation17] sm:$0xff]
        %v536 = vld [vmem:[#allocation7] sm:$0xff]
        %v537 = vld [vmem:[#allocation7 + $0x8] sm:$0xff]
        %v538 = vld [vmem:[#allocation7 + $0x10] sm:$0xff]
        %v539 = vld [vmem:[#allocation7 + $0x18] sm:$0xff]
        %v540 = vld [vmem:[#allocation7 + $0x20] sm:$0xff]
        %v541 = vld [vmem:[#allocation7 + $0x28] sm:$0xff]
        %v542 = vld [vmem:[#allocation7 + $0x30] sm:$0xff]
        %v543 = vld [vmem:[#allocation7 + $0x38] sm:$0xff]
        %v544 = vld [vmem:[#allocation7 + $0x40] sm:$0xff]
        %v545 = vld [vmem:[#allocation7 + $0x48] sm:$0xff]
        %v546 = vld [vmem:[#allocation7 + $0x50] sm:$0xff]
        %v547 = vld [vmem:[#allocation7 + $0x58] sm:$0xff]
        %v548 = vld [vmem:[#allocation7 + $0x60] sm:$0xff]
        %v549 = vld [vmem:[#allocation7 + $0x68] sm:$0xff]
        %v550 = vld [vmem:[#allocation7 + $0x70] sm:$0xff]
        %v551 = vld [vmem:[#allocation7 + $0x78] sm:$0xff]
        %v552 = vld [vmem:[#allocation8] sm:$0xff]
        %v553 = vld [vmem:[#allocation8 + $0x8] sm:$0xff]
        %v554 = vld [vmem:[#allocation8 + $0x10] sm:$0xff]
        %v555 = vld [vmem:[#allocation8 + $0x18] sm:$0xff]
        %v556 = vld [vmem:[#allocation8 + $0x20] sm:$0xff]
        %v557 = vld [vmem:[#allocation8 + $0x28] sm:$0xff]
        %v558 = vld [vmem:[#allocation8 + $0x30] sm:$0xff]
        %v559 = vld [vmem:[#allocation8 + $0x38] sm:$0xff]
        %v560 = vld [vmem:[#allocation8 + $0x40] sm:$0xff]
        %v561 = vld [vmem:[#allocation8 + $0x48] sm:$0xff]
        %v562 = vld [vmem:[#allocation8 + $0x50] sm:$0xff]
        %v563 = vld [vmem:[#allocation8 + $0x58] sm:$0xff]
        %v564 = vld [vmem:[#allocation8 + $0x60] sm:$0xff]
        %v565 = vld [vmem:[#allocation8 + $0x68] sm:$0xff]
        %v566 = vld [vmem:[#allocation8 + $0x70] sm:$0xff]
        %v567 = vld [vmem:[#allocation8 + $0x78] sm:$0xff]
        %568 = vmatprep.subr.mxu0 0.0
        %569 = vmatpush1.msra.mxu0 %v552
        %570 = vmatprep.subr.mxu0 0.0
        %571 = vmatpush1.msra.mxu0 %v553
        %572 = vmatprep.subr.mxu0 0.0
        %573 = vmatpush1.msra.mxu0 %v554
        %574 = vmatprep.subr.mxu0 0.0
        %575 = vmatpush1.msra.mxu0 %v555
        %576 = vmatprep.subr.mxu0 0.0
        %577 = vmatpush1.msra.mxu0 %v556
        %578 = vmatprep.subr.mxu0 0.0
        %579 = vmatpush1.msra.mxu0 %v557
        %580 = vmatprep.subr.mxu0 0.0
        %581 = vmatpush1.msra.mxu0 %v558
        %582 = vmatprep.subr.mxu0 0.0
        %583 = vmatpush1.msra.mxu0 %v559
        %584 = vmatprep.subr.mxu0 0.0
        %585 = vmatpush1.msra.mxu0 %v560
        %586 = vmatprep.subr.mxu0 0.0
        %587 = vmatpush1.msra.mxu0 %v561
        %588 = vmatprep.subr.mxu0 0.0
        %589 = vmatpush1.msra.mxu0 %v562
        %590 = vmatprep.subr.mxu0 0.0
        %591 = vmatpush1.msra.mxu0 %v563
        %592 = vmatprep.subr.mxu0 0.0
        %593 = vmatpush1.msra.mxu0 %v564
        %594 = vmatprep.subr.mxu0 0.0
        %595 = vmatpush1.msra.mxu0 %v565
        %596 = vmatprep.subr.mxu0 0.0
        %597 = vmatpush1.msra.mxu0 %v566
        %598 = vmatprep.subr.mxu0 0.0
        %599 = vmatpush1.msra.mxu0 %v567
        %600 = vmatprep.subr.mxu0 0.0
        %601 = vmatpush1.msra.mxu0 0.0
        %602 = vmatprep.subr.mxu0 0.0
        %603 = vmatpush1.msra.mxu0 0.0
        %604 = vmatprep.subr.mxu0 0.0
        %605 = vmatpush1.msra.mxu0 0.0
        %606 = vmatprep.subr.mxu0 0.0
        %607 = vmatpush1.msra.mxu0 0.0
        %608 = vmatprep.subr.mxu0 0.0
        %609 = vmatpush1.msra.mxu0 0.0
        %610 = vmatprep.subr.mxu0 0.0
        %611 = vmatpush1.msra.mxu0 0.0
        %612 = vmatprep.subr.mxu0 0.0
        %613 = vmatpush1.msra.mxu0 0.0
        %614 = vmatprep.subr.mxu0 0.0
        %615 = vmatpush1.msra.mxu0 0.0
        %616 = vmatprep.subr.mxu0 0.0
        %617 = vmatpush1.msra.mxu0 0.0
        %618 = vmatprep.subr.mxu0 0.0
        %619 = vmatpush1.msra.mxu0 0.0
        %620 = vmatprep.subr.mxu0 0.0
        %621 = vmatpush1.msra.mxu0 0.0
        %622 = vmatprep.subr.mxu0 0.0
        %623 = vmatpush1.msra.mxu0 0.0
        %624 = vmatprep.subr.mxu0 0.0
        %625 = vmatpush1.msra.mxu0 0.0
        %626 = vmatprep.subr.mxu0 0.0
        %627 = vmatpush1.msra.mxu0 0.0
        %628 = vmatprep.subr.mxu0 0.0
        %629 = vmatpush1.msra.mxu0 0.0
        %630 = vmatprep.subr.mxu0 0.0
        %631 = vmatpush1.msra.mxu0 0.0
        %632 = vmatprep.mubr.f32.mxu0 0.0
        %633 = vmatmul.mubr.f32.gmra.mrb[0].mxu0 %v535
        %v634 = vpop.f32.mrb[0].mxu0
        %v635 = vadd.f32 0.0, %v634
        %v636 = vpop.f32.mrb[0].mxu0
        %637 = vdwg.mxu0
        %638 = vmatprep.subr.mxu0 0.0
        %639 = vmatpush1.msra.mxu0 %v536
        %640 = vmatprep.subr.mxu0 0.0
        %641 = vmatpush1.msra.mxu0 %v537
        %642 = vmatprep.subr.mxu0 0.0
        %643 = vmatpush1.msra.mxu0 %v538
        %644 = vmatprep.subr.mxu0 0.0
        %645 = vmatpush1.msra.mxu0 %v539
        %646 = vmatprep.subr.mxu0 0.0
        %647 = vmatpush1.msra.mxu0 %v540
        %648 = vmatprep.subr.mxu0 0.0
        %649 = vmatpush1.msra.mxu0 %v541
        %650 = vmatprep.subr.mxu0 0.0
        %651 = vmatpush1.msra.mxu0 %v542
        %652 = vmatprep.subr.mxu0 0.0
        %653 = vmatpush1.msra.mxu0 %v543
        %654 = vmatprep.subr.mxu0 0.0
        %655 = vmatpush1.msra.mxu0 %v544
        %656 = vmatprep.subr.mxu0 0.0
        %657 = vmatpush1.msra.mxu0 %v545
        %658 = vmatprep.subr.mxu0 0.0
        %659 = vmatpush1.msra.mxu0 %v546
        %660 = vmatprep.subr.mxu0 0.0
        %661 = vmatpush1.msra.mxu0 %v547
        %662 = vmatprep.subr.mxu0 0.0
        %663 = vmatpush1.msra.mxu0 %v548
        %664 = vmatprep.subr.mxu0 0.0
        %665 = vmatpush1.msra.mxu0 %v549
        %666 = vmatprep.subr.mxu0 0.0
        %667 = vmatpush1.msra.mxu0 %v550
        %668 = vmatprep.subr.mxu0 0.0
        %669 = vmatpush1.msra.mxu0 %v551
        %670 = vmatprep.subr.mxu0 0.0
        %671 = vmatpush1.msra.mxu0 0.0
        %672 = vmatprep.subr.mxu0 0.0
        %673 = vmatpush1.msra.mxu0 0.0
        %674 = vmatprep.subr.mxu0 0.0
        %675 = vmatpush1.msra.mxu0 0.0
        %676 = vmatprep.subr.mxu0 0.0
        %677 = vmatpush1.msra.mxu0 0.0
        %678 = vmatprep.subr.mxu0 0.0
        %679 = vmatpush1.msra.mxu0 0.0
        %680 = vmatprep.subr.mxu0 0.0
        %681 = vmatpush1.msra.mxu0 0.0
        %682 = vmatprep.subr.mxu0 0.0
        %683 = vmatpush1.msra.mxu0 0.0
        %684 = vmatprep.subr.mxu0 0.0
        %685 = vmatpush1.msra.mxu0 0.0
        %686 = vmatprep.subr.mxu0 0.0
        %687 = vmatpush1.msra.mxu0 0.0
        %688 = vmatprep.subr.mxu0 0.0
        %689 = vmatpush1.msra.mxu0 0.0
        %690 = vmatprep.subr.mxu0 0.0
        %691 = vmatpush1.msra.mxu0 0.0
        %692 = vmatprep.subr.mxu0 0.0
        %693 = vmatpush1.msra.mxu0 0.0
        %694 = vmatprep.subr.mxu0 0.0
        %695 = vmatpush1.msra.mxu0 0.0
        %696 = vmatprep.subr.mxu0 0.0
        %697 = vmatpush1.msra.mxu0 0.0
        %698 = vmatprep.subr.mxu0 0.0
        %699 = vmatpush1.msra.mxu0 0.0
        %700 = vmatprep.subr.mxu0 0.0
        %701 = vmatpush1.msra.mxu0 0.0
        %702 = vmatprep.mubr.f32.mxu0 0.0
        %703 = vmatmul.mubr.f32.gmra.mrb[0].mxu0 %v534
        %v704 = vpop.f32.mrb[0].mxu0
        %v705 = vadd.f32 %v635, %v704
        %v706 = vpop.f32.mrb[0].mxu0
        %707 = vdwg.mxu0
        %v708 = vld [vmem:[%s4] sm:$0x1]
        %v710 = vlaneseq
        %v711 = vshrl.u32 %v710, 7
        %v712 = vsub.s32 0, %v711
        %v713 = vrot.slane %v708, %v712
        %v715 = vadd.f32 %v705, %v713
        %v716 = vld [vmem:[#allocation10] sm:$0xff]
        %v717 = vld [vmem:[#allocation10 + $0x8] sm:$0xff]
        %v718 = vld [vmem:[#allocation10 + $0x10] sm:$0xff]
        %v719 = vld [vmem:[#allocation10 + $0x18] sm:$0xff]
        %v720 = vld [vmem:[#allocation10 + $0x20] sm:$0xff]
        %v721 = vld [vmem:[#allocation10 + $0x28] sm:$0xff]
        %v722 = vld [vmem:[#allocation10 + $0x30] sm:$0xff]
        %v723 = vld [vmem:[#allocation10 + $0x38] sm:$0xff]
        %v724 = vld [vmem:[#allocation10 + $0x40] sm:$0xff]
        %v725 = vld [vmem:[#allocation10 + $0x48] sm:$0xff]
        %v726 = vld [vmem:[#allocation10 + $0x50] sm:$0xff]
        %v727 = vld [vmem:[#allocation10 + $0x58] sm:$0xff]
        %v728 = vld [vmem:[#allocation10 + $0x60] sm:$0xff]
        %v729 = vld [vmem:[#allocation10 + $0x68] sm:$0xff]
        %v730 = vld [vmem:[#allocation10 + $0x70] sm:$0xff]
        %v731 = vld [vmem:[#allocation10 + $0x78] sm:$0xff]
        %v732 = vld [vmem:[#allocation11] sm:$0xff]
        %v733 = vld [vmem:[#allocation11 + $0x8] sm:$0xff]
        %v734 = vld [vmem:[#allocation11 + $0x10] sm:$0xff]
        %v735 = vld [vmem:[#allocation11 + $0x18] sm:$0xff]
        %v736 = vld [vmem:[#allocation11 + $0x20] sm:$0xff]
        %v737 = vld [vmem:[#allocation11 + $0x28] sm:$0xff]
        %v738 = vld [vmem:[#allocation11 + $0x30] sm:$0xff]
        %v739 = vld [vmem:[#allocation11 + $0x38] sm:$0xff]
        %v740 = vld [vmem:[#allocation11 + $0x40] sm:$0xff]
        %v741 = vld [vmem:[#allocation11 + $0x48] sm:$0xff]
        %v742 = vld [vmem:[#allocation11 + $0x50] sm:$0xff]
        %v743 = vld [vmem:[#allocation11 + $0x58] sm:$0xff]
        %v744 = vld [vmem:[#allocation11 + $0x60] sm:$0xff]
        %v745 = vld [vmem:[#allocation11 + $0x68] sm:$0xff]
        %v746 = vld [vmem:[#allocation11 + $0x70] sm:$0xff]
        %v747 = vld [vmem:[#allocation11 + $0x78] sm:$0xff]
        %748 = vmatprep.subr.mxu0 0.0
        %749 = vmatpush1.msra.mxu0 %v732
        %750 = vmatprep.subr.mxu0 0.0
        %751 = vmatpush1.msra.mxu0 %v733
        %752 = vmatprep.subr.mxu0 0.0
        %753 = vmatpush1.msra.mxu0 %v734
        %754 = vmatprep.subr.mxu0 0.0
        %755 = vmatpush1.msra.mxu0 %v735
        %756 = vmatprep.subr.mxu0 0.0
        %757 = vmatpush1.msra.mxu0 %v736
        %758 = vmatprep.subr.mxu0 0.0
        %759 = vmatpush1.msra.mxu0 %v737
        %760 = vmatprep.subr.mxu0 0.0
        %761 = vmatpush1.msra.mxu0 %v738
        %762 = vmatprep.subr.mxu0 0.0
        %763 = vmatpush1.msra.mxu0 %v739
        %764 = vmatprep.subr.mxu0 0.0
        %765 = vmatpush1.msra.mxu0 %v740
        %766 = vmatprep.subr.mxu0 0.0
        %767 = vmatpush1.msra.mxu0 %v741
        %768 = vmatprep.subr.mxu0 0.0
        %769 = vmatpush1.msra.mxu0 %v742
        %770 = vmatprep.subr.mxu0 0.0
        %771 = vmatpush1.msra.mxu0 %v743
        %772 = vmatprep.subr.mxu0 0.0
        %773 = vmatpush1.msra.mxu0 %v744
        %774 = vmatprep.subr.mxu0 0.0
        %775 = vmatpush1.msra.mxu0 %v745
        %776 = vmatprep.subr.mxu0 0.0
        %777 = vmatpush1.msra.mxu0 %v746
        %778 = vmatprep.subr.mxu0 0.0
        %779 = vmatpush1.msra.mxu0 %v747
        %780 = vmatprep.subr.mxu0 0.0
        %781 = vmatpush1.msra.mxu0 0.0
        %782 = vmatprep.subr.mxu0 0.0
        %783 = vmatpush1.msra.mxu0 0.0
        %784 = vmatprep.subr.mxu0 0.0
        %785 = vmatpush1.msra.mxu0 0.0
        %786 = vmatprep.subr.mxu0 0.0
        %787 = vmatpush1.msra.mxu0 0.0
        %788 = vmatprep.subr.mxu0 0.0
        %789 = vmatpush1.msra.mxu0 0.0
        %790 = vmatprep.subr.mxu0 0.0
        %791 = vmatpush1.msra.mxu0 0.0
        %792 = vmatprep.subr.mxu0 0.0
        %793 = vmatpush1.msra.mxu0 0.0
        %794 = vmatprep.subr.mxu0 0.0
        %795 = vmatpush1.msra.mxu0 0.0
        %796 = vmatprep.subr.mxu0 0.0
        %797 = vmatpush1.msra.mxu0 0.0
        %798 = vmatprep.subr.mxu0 0.0
        %799 = vmatpush1.msra.mxu0 0.0
        %800 = vmatprep.subr.mxu0 0.0
        %801 = vmatpush1.msra.mxu0 0.0
        %802 = vmatprep.subr.mxu0 0.0
        %803 = vmatpush1.msra.mxu0 0.0
        %804 = vmatprep.subr.mxu0 0.0
        %805 = vmatpush1.msra.mxu0 0.0
        %806 = vmatprep.subr.mxu0 0.0
        %807 = vmatpush1.msra.mxu0 0.0
        %808 = vmatprep.subr.mxu0 0.0
        %809 = vmatpush1.msra.mxu0 0.0
        %810 = vmatprep.subr.mxu0 0.0
        %811 = vmatpush1.msra.mxu0 0.0
        %812 = vmatprep.mubr.f32.mxu0 0.0
        %813 = vmatmul.mubr.f32.gmra.mrb[0].mxu0 %v535
        %v814 = vpop.f32.mrb[0].mxu0
        %v815 = vadd.f32 0.0, %v814
        %v816 = vpop.f32.mrb[0].mxu0
        %817 = vdwg.mxu0
        %818 = vmatprep.subr.mxu0 0.0
        %819 = vmatpush1.msra.mxu0 %v716
        %820 = vmatprep.subr.mxu0 0.0
        %821 = vmatpush1.msra.mxu0 %v717
        %822 = vmatprep.subr.mxu0 0.0
        %823 = vmatpush1.msra.mxu0 %v718
        %824 = vmatprep.subr.mxu0 0.0
        %825 = vmatpush1.msra.mxu0 %v719
        %826 = vmatprep.subr.mxu0 0.0
        %827 = vmatpush1.msra.mxu0 %v720
        %828 = vmatprep.subr.mxu0 0.0
        %829 = vmatpush1.msra.mxu0 %v721
        %830 = vmatprep.subr.mxu0 0.0
        %831 = vmatpush1.msra.mxu0 %v722
        %832 = vmatprep.subr.mxu0 0.0
        %833 = vmatpush1.msra.mxu0 %v723
        %834 = vmatprep.subr.mxu0 0.0
        %835 = vmatpush1.msra.mxu0 %v724
        %836 = vmatprep.subr.mxu0 0.0
        %837 = vmatpush1.msra.mxu0 %v725
        %838 = vmatprep.subr.mxu0 0.0
        %839 = vmatpush1.msra.mxu0 %v726
        %840 = vmatprep.subr.mxu0 0.0
        %841 = vmatpush1.msra.mxu0 %v727
        %842 = vmatprep.subr.mxu0 0.0
        %843 = vmatpush1.msra.mxu0 %v728
        %844 = vmatprep.subr.mxu0 0.0
        %845 = vmatpush1.msra.mxu0 %v729
        %846 = vmatprep.subr.mxu0 0.0
        %847 = vmatpush1.msra.mxu0 %v730
        %848 = vmatprep.subr.mxu0 0.0
        %849 = vmatpush1.msra.mxu0 %v731
        %850 = vmatprep.subr.mxu0 0.0
        %851 = vmatpush1.msra.mxu0 0.0
        %852 = vmatprep.subr.mxu0 0.0
        %853 = vmatpush1.msra.mxu0 0.0
        %854 = vmatprep.subr.mxu0 0.0
        %855 = vmatpush1.msra.mxu0 0.0
        %856 = vmatprep.subr.mxu0 0.0
        %857 = vmatpush1.msra.mxu0 0.0
        %858 = vmatprep.subr.mxu0 0.0
        %859 = vmatpush1.msra.mxu0 0.0
        %860 = vmatprep.subr.mxu0 0.0
        %861 = vmatpush1.msra.mxu0 0.0
        %862 = vmatprep.subr.mxu0 0.0
        %863 = vmatpush1.msra.mxu0 0.0
        %864 = vmatprep.subr.mxu0 0.0
        %865 = vmatpush1.msra.mxu0 0.0
        %866 = vmatprep.subr.mxu0 0.0
        %867 = vmatpush1.msra.mxu0 0.0
        %868 = vmatprep.subr.mxu0 0.0
        %869 = vmatpush1.msra.mxu0 0.0
        %870 = vmatprep.subr.mxu0 0.0
        %871 = vmatpush1.msra.mxu0 0.0
        %872 = vmatprep.subr.mxu0 0.0
        %873 = vmatpush1.msra.mxu0 0.0
        %874 = vmatprep.subr.mxu0 0.0
        %875 = vmatpush1.msra.mxu0 0.0
        %876 = vmatprep.subr.mxu0 0.0
        %877 = vmatpush1.msra.mxu0 0.0
        %878 = vmatprep.subr.mxu0 0.0
        %879 = vmatpush1.msra.mxu0 0.0
        %880 = vmatprep.subr.mxu0 0.0
        %881 = vmatpush1.msra.mxu0 0.0
        %882 = vmatprep.mubr.f32.mxu0 0.0
        %883 = vmatmul.mubr.f32.gmra.mrb[0].mxu0 %v534
        %v884 = vpop.f32.mrb[0].mxu0
        %v885 = vadd.f32 %v815, %v884
        %v886 = vpop.f32.mrb[0].mxu0
        %887 = vdwg.mxu0
        %v888 = vld [vmem:[%s7] sm:$0x1]
        %v890 = vlaneseq
        %v891 = vshrl.u32 %v890, 7
        %v892 = vsub.s32 0, %v891
        %v893 = vrot.slane %v888, %v892
        %v895 = vadd.f32 %v885, %v893
        %v896 = vld [vmem:[#allocation13] sm:$0xff]
        %v897 = vld [vmem:[#allocation13 + $0x8] sm:$0xff]
        %v898 = vld [vmem:[#allocation13 + $0x10] sm:$0xff]
        %v899 = vld [vmem:[#allocation13 + $0x18] sm:$0xff]
        %v900 = vld [vmem:[#allocation13 + $0x20] sm:$0xff]
        %v901 = vld [vmem:[#allocation13 + $0x28] sm:$0xff]
        %v902 = vld [vmem:[#allocation13 + $0x30] sm:$0xff]
        %v903 = vld [vmem:[#allocation13 + $0x38] sm:$0xff]
        %v904 = vld [vmem:[#allocation13 + $0x40] sm:$0xff]
        %v905 = vld [vmem:[#allocation13 + $0x48] sm:$0xff]
        %v906 = vld [vmem:[#allocation13 + $0x50] sm:$0xff]
        %v907 = vld [vmem:[#allocation13 + $0x58] sm:$0xff]
        %v908 = vld [vmem:[#allocation13 + $0x60] sm:$0xff]
        %v909 = vld [vmem:[#allocation13 + $0x68] sm:$0xff]
        %v910 = vld [vmem:[#allocation13 + $0x70] sm:$0xff]
        %v911 = vld [vmem:[#allocation13 + $0x78] sm:$0xff]
        %v912 = vld [vmem:[#allocation14] sm:$0xff]
        %v913 = vld [vmem:[#allocation14 + $0x8] sm:$0xff]
        %v914 = vld [vmem:[#allocation14 + $0x10] sm:$0xff]
        %v915 = vld [vmem:[#allocation14 + $0x18] sm:$0xff]
        %v916 = vld [vmem:[#allocation14 + $0x20] sm:$0xff]
        %v917 = vld [vmem:[#allocation14 + $0x28] sm:$0xff]
        %v918 = vld [vmem:[#allocation14 + $0x30] sm:$0xff]
        %v919 = vld [vmem:[#allocation14 + $0x38] sm:$0xff]
        %v920 = vld [vmem:[#allocation14 + $0x40] sm:$0xff]
        %v921 = vld [vmem:[#allocation14 + $0x48] sm:$0xff]
        %v922 = vld [vmem:[#allocation14 + $0x50] sm:$0xff]
        %v923 = vld [vmem:[#allocation14 + $0x58] sm:$0xff]
        %v924 = vld [vmem:[#allocation14 + $0x60] sm:$0xff]
        %v925 = vld [vmem:[#allocation14 + $0x68] sm:$0xff]
        %v926 = vld [vmem:[#allocation14 + $0x70] sm:$0xff]
        %v927 = vld [vmem:[#allocation14 + $0x78] sm:$0xff]
        %928 = vmatprep.subr.mxu0 0.0
        %929 = vmatpush1.msra.mxu0 %v912
        %930 = vmatprep.subr.mxu0 0.0
        %931 = vmatpush1.msra.mxu0 %v913
        %932 = vmatprep.subr.mxu0 0.0
        %933 = vmatpush1.msra.mxu0 %v914
        %934 = vmatprep.subr.mxu0 0.0
        %935 = vmatpush1.msra.mxu0 %v915
        %936 = vmatprep.subr.mxu0 0.0
        %937 = vmatpush1.msra.mxu0 %v916
        %938 = vmatprep.subr.mxu0 0.0
        %939 = vmatpush1.msra.mxu0 %v917
        %940 = vmatprep.subr.mxu0 0.0
        %941 = vmatpush1.msra.mxu0 %v918
        %942 = vmatprep.subr.mxu0 0.0
        %943 = vmatpush1.msra.mxu0 %v919
        %944 = vmatprep.subr.mxu0 0.0
        %945 = vmatpush1.msra.mxu0 %v920
        %946 = vmatprep.subr.mxu0 0.0
        %947 = vmatpush1.msra.mxu0 %v921
        %948 = vmatprep.subr.mxu0 0.0
        %949 = vmatpush1.msra.mxu0 %v922
        %950 = vmatprep.subr.mxu0 0.0
        %951 = vmatpush1.msra.mxu0 %v923
        %952 = vmatprep.subr.mxu0 0.0
        %953 = vmatpush1.msra.mxu0 %v924
        %954 = vmatprep.subr.mxu0 0.0
        %955 = vmatpush1.msra.mxu0 %v925
        %956 = vmatprep.subr.mxu0 0.0
        %957 = vmatpush1.msra.mxu0 %v926
        %958 = vmatprep.subr.mxu0 0.0
        %959 = vmatpush1.msra.mxu0 %v927
        %960 = vmatprep.subr.mxu0 0.0
        %961 = vmatpush1.msra.mxu0 0.0
        %962 = vmatprep.subr.mxu0 0.0
        %963 = vmatpush1.msra.mxu0 0.0
        %964 = vmatprep.subr.mxu0 0.0
        %965 = vmatpush1.msra.mxu0 0.0
        %966 = vmatprep.subr.mxu0 0.0
        %967 = vmatpush1.msra.mxu0 0.0
        %968 = vmatprep.subr.mxu0 0.0
        %969 = vmatpush1.msra.mxu0 0.0
        %970 = vmatprep.subr.mxu0 0.0
        %971 = vmatpush1.msra.mxu0 0.0
        %972 = vmatprep.subr.mxu0 0.0
        %973 = vmatpush1.msra.mxu0 0.0
        %974 = vmatprep.subr.mxu0 0.0
        %975 = vmatpush1.msra.mxu0 0.0
        %976 = vmatprep.subr.mxu0 0.0
        %977 = vmatpush1.msra.mxu0 0.0
        %978 = vmatprep.subr.mxu0 0.0
        %979 = vmatpush1.msra.mxu0 0.0
        %980 = vmatprep.subr.mxu0 0.0
        %981 = vmatpush1.msra.mxu0 0.0
        %982 = vmatprep.subr.mxu0 0.0
        %983 = vmatpush1.msra.mxu0 0.0
        %984 = vmatprep.subr.mxu0 0.0
        %985 = vmatpush1.msra.mxu0 0.0
        %986 = vmatprep.subr.mxu0 0.0
        %987 = vmatpush1.msra.mxu0 0.0
        %988 = vmatprep.subr.mxu0 0.0
        %989 = vmatpush1.msra.mxu0 0.0
        %990 = vmatprep.subr.mxu0 0.0
        %991 = vmatpush1.msra.mxu0 0.0
        %992 = vmatprep.mubr.f32.mxu0 0.0
        %993 = vmatmul.mubr.f32.gmra.mrb[0].mxu0 %v895
        %v994 = vpop.f32.mrb[0].mxu0
        %v995 = vadd.f32 0.0, %v994
        %v996 = vpop.f32.mrb[0].mxu0
        %997 = vdwg.mxu0
        %998 = vmatprep.subr.mxu0 0.0
        %999 = vmatpush1.msra.mxu0 %v896
        %1000 = vmatprep.subr.mxu0 0.0
        %1001 = vmatpush1.msra.mxu0 %v897
        %1002 = vmatprep.subr.mxu0 0.0
        %1003 = vmatpush1.msra.mxu0 %v898
        %1004 = vmatprep.subr.mxu0 0.0
        %1005 = vmatpush1.msra.mxu0 %v899
        %1006 = vmatprep.subr.mxu0 0.0
        %1007 = vmatpush1.msra.mxu0 %v900
        %1008 = vmatprep.subr.mxu0 0.0
        %1009 = vmatpush1.msra.mxu0 %v901
        %1010 = vmatprep.subr.mxu0 0.0
        %1011 = vmatpush1.msra.mxu0 %v902
        %1012 = vmatprep.subr.mxu0 0.0
        %1013 = vmatpush1.msra.mxu0 %v903
        %1014 = vmatprep.subr.mxu0 0.0
        %1015 = vmatpush1.msra.mxu0 %v904
        %1016 = vmatprep.subr.mxu0 0.0
        %1017 = vmatpush1.msra.mxu0 %v905
        %1018 = vmatprep.subr.mxu0 0.0
        %1019 = vmatpush1.msra.mxu0 %v906
        %1020 = vmatprep.subr.mxu0 0.0
        %1021 = vmatpush1.msra.mxu0 %v907
        %1022 = vmatprep.subr.mxu0 0.0
        %1023 = vmatpush1.msra.mxu0 %v908
        %1024 = vmatprep.subr.mxu0 0.0
        %1025 = vmatpush1.msra.mxu0 %v909
        %1026 = vmatprep.subr.mxu0 0.0
        %1027 = vmatpush1.msra.mxu0 %v910
        %1028 = vmatprep.subr.mxu0 0.0
        %1029 = vmatpush1.msra.mxu0 %v911
        %1030 = vmatprep.subr.mxu0 0.0
        %1031 = vmatpush1.msra.mxu0 0.0
        %1032 = vmatprep.subr.mxu0 0.0
        %1033 = vmatpush1.msra.mxu0 0.0
        %1034 = vmatprep.subr.mxu0 0.0
        %1035 = vmatpush1.msra.mxu0 0.0
        %1036 = vmatprep.subr.mxu0 0.0
        %1037 = vmatpush1.msra.mxu0 0.0
        %1038 = vmatprep.subr.mxu0 0.0
        %1039 = vmatpush1.msra.mxu0 0.0
        %1040 = vmatprep.subr.mxu0 0.0
        %1041 = vmatpush1.msra.mxu0 0.0
        %1042 = vmatprep.subr.mxu0 0.0
        %1043 = vmatpush1.msra.mxu0 0.0
        %1044 = vmatprep.subr.mxu0 0.0
        %1045 = vmatpush1.msra.mxu0 0.0
        %1046 = vmatprep.subr.mxu0 0.0
        %1047 = vmatpush1.msra.mxu0 0.0
        %1048 = vmatprep.subr.mxu0 0.0
        %1049 = vmatpush1.msra.mxu0 0.0
        %1050 = vmatprep.subr.mxu0 0.0
        %1051 = vmatpush1.msra.mxu0 0.0
        %1052 = vmatprep.subr.mxu0 0.0
        %1053 = vmatpush1.msra.mxu0 0.0
        %1054 = vmatprep.subr.mxu0 0.0
        %1055 = vmatpush1.msra.mxu0 0.0
        %1056 = vmatprep.subr.mxu0 0.0
        %1057 = vmatpush1.msra.mxu0 0.0
        %1058 = vmatprep.subr.mxu0 0.0
        %1059 = vmatpush1.msra.mxu0 0.0
        %1060 = vmatprep.subr.mxu0 0.0
        %1061 = vmatpush1.msra.mxu0 0.0
        %1062 = vmatprep.mubr.f32.mxu0 0.0
        %1063 = vmatmul.mubr.f32.gmra.mrb[0].mxu0 %v715
        %v1064 = vpop.f32.mrb[0].mxu0
        %v1065 = vadd.f32 %v995, %v1064
        %v1066 = vpop.f32.mrb[0].mxu0
        %1067 = vdwg.mxu0
        %v1068 = vld [vmem:[%s10] sm:$0x1]
        %v1070 = vlaneseq
        %v1071 = vshrl.u32 %v1070, 7
        %v1072 = vsub.s32 0, %v1071
        %v1073 = vrot.slane %v1068, %v1072
        %v1075 = vadd.f32 %v1065, %v1073
        %1076 = vmax.xlane.f32.xlu0 %v1075
        %v1077 = vpop.xlane.xlu0 %1076
        %v1078 = vsub.f32 %v1075, %v1077
        %v1079 = vmul.f32 %v1078, 1.442695
        %v1080 = vpow.pop %v1079
        %1081 = vadd.xlane.f32.xlu0 %v1080
        %v1082 = vpop.xlane.xlu0 %1081
        %v1083 = vlog2.pop %v1082
        %v1084 = vmul.f32 %v1083, 0.6931472
        %v1085 = vsub.f32 %v1078, %v1084
        %1086 = vst [vmem:[%s525] sm:$0xff] %v1085
        %1087 = vst [vmem:[#allocation17] sm:$0xff] %v715
        %s1088 = sand.u32 %s279, 1
        %s1089 = scalar_lea.sflag [#allocation4], %s1088
        %s1090 = sand.u32 %s279, 1
        %s1091 = smul.addr %s1090, 8
        %s1092 = scalar_lea.vmem [#allocation16], %s1091
        // Predicated region
        $region101: #{tpu_custom_call.1} parent=63 // pred_check
          %p1093 = pneg %p289
        $region102: #{tpu_custom_call.1} parent=63 // pred_check_branch
          %1095 = sbr.rel (%p1093) target = $region104
        $region103: #{tpu_custom_call.1} parent=63 // pred_region
          %s1097 = ssub.s32 128, 128
          %1098 = vsyncadd %s1089, %s1097
          %s1099 = smul.addr %s35, 128
          %s1100 = scalar_lea.hbm %s11, %s1099
          %s1102 = sshll.u32 %s1092, 4
          %s1103 = int_to_ptr.vmem [resolvable:$true] %s1102
          %1105 = dma.vmem_to_hbm [thread:$0]  %s1103, 128, %s1100, %s1089
        $region104: #{tpu_custom_call.1} parent=63 // pred_fallthru
          _
        // Predicated region
        $region105: #{tpu_custom_call.1} parent=63 // pred_check
          %p1106 = pneg %p310
        $region106: #{tpu_custom_call.1} parent=63 // pred_check_branch
          %1108 = sbr.rel (%p1106) target = $region108
        $region107: #{tpu_custom_call.1} parent=63 // pred_region
          %s1110 = ssub.s32 128, 128
          %1111 = vsyncadd [#allocation18], %s1110
          %s1113 = sshll.u32 [#allocation17], 4
          %s1114 = int_to_ptr.vmem [resolvable:$true] %s1113
          %1116 = dma.vmem_to_hbm [thread:$0]  %s1114, 128, %s12, [#allocation18]
        $region108: #{tpu_custom_call.1} parent=63 // pred_fallthru
          _
        // Predicated region
        $region109: #{tpu_custom_call.1} parent=63 // pred_check
          %p1117 = pneg %p310
        $region110: #{tpu_custom_call.1} parent=63 // pred_check_branch
          %1119 = sbr.rel (%p1117) target = $region112
        $region111: #{tpu_custom_call.1} parent=63 // pred_region
          %1120 = dma.done [#allocation18], 128
        $region112: #{tpu_custom_call.1} parent=63 // pred_fallthru
          _
      $region64: #{tpu_custom_call.1} parent=5 // pred_fallthru
        _
      %p1121 = scmp.le.s32.totalorder 2, %s30
      // Predicated region
      $region113: #{tpu_custom_call.1} parent=5 // pred_check
        %p1122 = pneg %p1121
      $region114: #{tpu_custom_call.1} parent=5 // pred_check_branch
        %1124 = sbr.rel (%p1122) target = $region116
      $region115: #{tpu_custom_call.1} parent=5 // pred_region
        %s1125 = ssub.s32 %s30, 2
        // Predicated region
        $region117: #{tpu_custom_call.1} parent=115 // pred_check
          %p1126 = pneg %p295
        $region118: #{tpu_custom_call.1} parent=115 // pred_check_branch
          %1128 = sbr.rel (%p1126) target = $region120
        $region119: #{tpu_custom_call.1} parent=115 // pred_region
          %s1129 = sand.u32 %s280, 1
          %s1130 = scalar_lea.sflag [#allocation4], %s1129
          %s1131 = sand.u32 %s280, 1
          %s1132 = smul.addr %s1131, 8
          %s1133 = scalar_lea.vmem [#allocation16], %s1132
          %1134 = dma.done %s1130, 128
        $region120: #{tpu_custom_call.1} parent=115 // pred_fallthru
          _
      $region116: #{tpu_custom_call.1} parent=5 // pred_fallthru
        _
    $region6: #{tpu_custom_call.1} parent=1 // loop_footer
      %s34 = sadd.s32 1, %s30
    $region7: #{tpu_custom_call.1} parent=1 // loop_footer_branch
      %29 = sbr.rel target = $region3
    $region8: #{tpu_custom_call.1} parent=1 // loop_exit
      _
    %1135 = vsyncpa [#allocation3], 1
    %s1136 = scalar_lea.sflag [#allocation3], 1
    %1137 = vsyncpa %s1136, 1
    %1138 = vsyncpa [#allocation6], 1
    %1139 = vsyncpa [#allocation9], 1
    %1140 = vsyncpa [#allocation12], 1
    %1141 = vsyncpa [#allocation15], 1
    %1142 = vsyncpa [#allocation4], 1
    %s1143 = scalar_lea.sflag [#allocation4], 1
    %1144 = vsyncpa %s1143, 1
    %1145 = vsyncpa [#allocation18], 1

</llo_original>
